<compile_context>
chip_gen: v5e
topology: v5e:2x2
jax: 0.10.0
libtpu: 0.0.40
codegen_flags: <defaults>
</compile_context>

<pallas_src>
import numpy as np

import jax
import jax.numpy as jnp
from jax.experimental import pallas as pl
from jax.experimental.pallas import tpu as pltpu

_LANE = 128


def _acblock_kernel(x_ref, w_ref, out_ref, xpad_ref):
    # x_ref:    (Nb, H,  W*Cin)      unpadded input rows, channels fastest in lanes
    # w_ref:    (K*ROW, Wo*Cout)     Toeplitz-style fused weight (VMEM resident)
    # out_ref:  (Nb, Ho, Wo*Cout)    lane-dense output slab
    # xpad_ref: (Nb, Hp, ROW)        VMEM scratch: vertically zero-padded rows
    nb, h, wcin = x_ref.shape
    _, ho, wocout = out_ref.shape
    _, hp, row = xpad_ref.shape
    k = w_ref.shape[0] // row
    p = (hp - h) // 2

    # Vertical + lane-tail zero padding into the dense scratch.  Re-zeroed
    # every step (a handful of vst with this layout); a program_id()==0 guard
    # would break under megacore splitting of the parallel batch axis.
    xpad_ref[...] = jnp.zeros_like(xpad_ref)
    xpad_ref[:, p:p + h, 0:wcin] = x_ref[...]

    # "im2col" over the vertical taps only: K lane-tile-aligned row windows
    # stacked along lanes.  Horizontal taps (and horizontal zero padding) are
    # already folded into w_ref, so this is the entire patch construction.
    patches = jnp.concatenate(
        [xpad_ref[:, kh:kh + ho, :] for kh in range(k)], axis=-1)
    patches = patches.reshape(nb * ho, k * row)        # (Nb*Ho, K*ROW)

    # Single MXU matmul per grid step: M = Nb*Ho, Kc = K*ROW, N = Wo*Cout.
    acc = jnp.dot(patches, w_ref[...], preferred_element_type=jnp.float32)
    out_ref[...] = acc.reshape(nb, ho, wocout).astype(out_ref.dtype)


def acblock_forward(x_nchw, w_sq, w_ver, w_hor, *, padding, stride=1,
                    dilation=1, groups=1, batch_block=1, compute_dtype=None):
    """ACBlock forward.  x_nchw: (N, Cin, H, W); weights in OIHW (PyTorch)."""
    assert stride == 1 and dilation == 1 and groups == 1, (
        "only stride=1, dilation=1, groups=1 (module defaults) are supported")
    N, Cin, H, W = x_nchw.shape
    c1, _, K, _ = w_sq.shape
    c2 = w_ver.shape[0]
    c3 = w_hor.shape[0]
    Cout = c1 + c2 + c3
    p = padding
    Ho = H + 2 * p - K + 1
    Wo = W + 2 * p - K + 1
    # torch.cat in the reference only works when the three convs agree
    # spatially, which requires padding == kernel_size // 2 (odd K).
    assert Ho == H and Wo == W, "ACBlock requires padding == kernel_size // 2"
    assert N % batch_block == 0, "batch_block must divide the batch size"
    dtype = compute_dtype if compute_dtype is not None else x_nchw.dtype

    # ---- fuse the three convolutions into ONE KxK convolution -------------
    # vertical (K,1) kernel -> centre column, horizontal (1,K) -> centre row;
    # concat along Cout matches torch.cat([x1, x2, x3], dim=1).
    wv_full = jnp.pad(w_ver, ((0, 0), (0, 0), (0, 0), (p, K - 1 - p)))
    wh_full = jnp.pad(w_hor, ((0, 0), (0, 0), (p, K - 1 - p), (0, 0)))
    w_cat = jnp.concatenate([w_sq, wv_full, wh_full], axis=0)   # (Cout,Cin,K,K)
    w_fused = jnp.transpose(w_cat, (2, 3, 1, 0)).astype(dtype)  # (K,K,Cin,Cout)

    # ---- fold horizontal taps + horizontal padding into a Toeplitz weight --
    # Wbig[kh*ROW + wi*Cin + c, wo*Cout + o] = w_fused[kh, wi-wo+p, c, o]
    # when 0 <= wi-wo+p < K, else 0.  Rows >= W*Cin are zero (lane-pad tail).
    ROW = ((W * Cin + _LANE - 1) // _LANE) * _LANE
    sel = np.zeros((K, Wo, W), np.float32)
    for kw in range(K):
        for wo in range(Wo):
            wi = wo + kw - p
            if 0 <= wi < W:
                sel[kw, wo, wi] = 1.0
    w_big = jnp.einsum('kvw,hkco->hwcvo', jnp.asarray(sel, dtype), w_fused)
    w_big = w_big.reshape(K, W * Cin, Wo * Cout)
    w_big = jnp.pad(w_big, ((0, 0), (0, ROW - W * Cin), (0, 0)))
    w_big = w_big.reshape(K * ROW, Wo * Cout)

    # NCHW -> (N, H, W*Cin): channels fastest along the lane dim.
    x_rows = jnp.transpose(x_nchw, (0, 2, 3, 1)).reshape(N, H, W * Cin)
    x_rows = x_rows.astype(dtype)

    Hp = H + 2 * p
    out = pl.pallas_call(
        _acblock_kernel,
        out_shape=jax.ShapeDtypeStruct((N, Ho, Wo * Cout), x_nchw.dtype),
        grid_spec=pltpu.PrefetchScalarGridSpec(
            num_scalar_prefetch=0,
            grid=(N // batch_block,),
            in_specs=[
                pl.BlockSpec((batch_block, H, W * Cin), lambda i: (i, 0, 0)),
                pl.BlockSpec((K * ROW, Wo * Cout), lambda i: (0, 0)),
            ],
            out_specs=pl.BlockSpec((batch_block, Ho, Wo * Cout),
                                   lambda i: (i, 0, 0)),
            scratch_shapes=[
                pltpu.VMEM((batch_block, Hp, ROW), dtype),
            ],
        ),
        compiler_params=pltpu.CompilerParams(
            dimension_semantics=("parallel",),
            # per-step footprint is well under 1 MiB; 32 MiB is safely inside
            # v7x's 64 MiB physical VMEM and fine on v5e/v6e.
            vmem_limit_bytes=32 * 1024 * 1024,
        ),
    )(x_rows, w_big)

    # (N, Ho, Wo*Cout) lane-dense slab -> NCHW to match the PyTorch module.
    out = out.reshape(N, Ho, Wo, Cout)
    return jnp.transpose(out, (0, 3, 1, 2))


if __name__ == "__main__":
    # Module config: orgACBlock(in_channels=4, out_channels=8, kernel_size=3,
    #                           stride=1, padding=1, bias=False)
    in_channels, out_channels, kernel_size, padding = 4, 8, 3, 1
    c1 = int(out_channels * 0.33)          # 2
    c2 = int(out_channels * 0.33)          # 2
    c3 = out_channels - c1 - c2            # 4

    key = jax.random.PRNGKey(0)
    k_x, k1, k2, k3 = jax.random.split(key, 4)
    x = jax.random.normal(k_x, (2, in_channels, 16, 16), jnp.float32)
    w_sq = 0.1 * jax.random.normal(
        k1, (c1, in_channels, kernel_size, kernel_size), jnp.float32)
    w_ver = 0.1 * jax.random.normal(
        k2, (c2, in_channels, kernel_size, 1), jnp.float32)
    w_hor = 0.1 * jax.random.normal(
        k3, (c3, in_channels, 1, kernel_size), jnp.float32)

    out = acblock_forward(x, w_sq, w_ver, w_hor, padding=padding,
                          batch_block=1)
    out = jax.block_until_ready(out)

    # Pure-JAX reference (matches nn.Conv2d semantics: NCHW / OIHW, no bias).
    dn = ('NCHW', 'OIHW', 'NCHW')
    ref1 = jax.lax.conv_general_dilated(
        x, w_sq, (1, 1), ((padding, padding), (padding, padding)),
        dimension_numbers=dn)
    ref2 = jax.lax.conv_general_dilated(
        x, w_ver, (1, 1), ((padding, padding), (0, 0)), dimension_numbers=dn)
    ref3 = jax.lax.conv_general_dilated(
        x, w_hor, (1, 1), ((0, 0), (padding, padding)), dimension_numbers=dn)
    ref = jnp.concatenate([ref1, ref2, ref3], axis=1)

    assert out.shape == ref.shape == (2, out_channels, 16, 16)
    assert jnp.allclose(out, ref, atol=1e-4, rtol=1e-4), "mismatch vs reference"
    print("KERNEL_OK")
</pallas_src>

<mosaic_0001>
module attributes {stable_mosaic.version = 11 : i64} {
  func.func @_acblock_kernel(%arg0: i32, %arg1: memref<1x16x64xf32, #tpu.memory_space<vmem>>, %arg2: memref<384x128xf32, #tpu.memory_space<vmem>>, %arg3: memref<1x16x128xf32, #tpu.memory_space<vmem>>, %arg4: memref<1x18x128xf32, #tpu.memory_space<vmem>>) attributes {dimension_semantics = [#tpu.dimension_semantics<parallel>], iteration_bounds = array<i64: 2>, scalar_prefetch = 0 : i64, scratch_operands = 1 : i64, tpu.core_type = #tpu.core_type<tc>, window_params = [{transform_indices = @transform_0, window_bounds = array<i64: 1, 16, 64>}, {pipeline_mode = #tpu.pipeline_mode<synchronous>, transform_indices = @transform_1, window_bounds = array<i64: 384, 128>}, {transform_indices = @transform_2, window_bounds = array<i64: 1, 16, 128>}]} {
    %cst = arith.constant 0.000000e+00 : f32
    %0 = vector.broadcast %cst : f32 to vector<1x18x128xf32>
    %c0 = arith.constant 0 : index
    %c0_0 = arith.constant 0 : index
    %c0_1 = arith.constant 0 : index
    %1 = vector.load %arg4[%c0, %c0_0, %c0_1] : memref<1x18x128xf32, #tpu.memory_space<vmem>>, vector<1x18x128xf32>
    tpu.vector_store %arg4[%c0, %c0_0, %c0_1], %0 {strides = array<i32>} : memref<1x18x128xf32, #tpu.memory_space<vmem>>, vector<1x18x128xf32>,
    %c0_2 = arith.constant 0 : index
    %c0_3 = arith.constant 0 : index
    %c0_4 = arith.constant 0 : index
    %2 = vector.load %arg1[%c0_2, %c0_3, %c0_4] : memref<1x16x64xf32, #tpu.memory_space<vmem>>, vector<1x16x64xf32>
    %c0_5 = arith.constant 0 : index
    %c1 = arith.constant 1 : index
    %c0_6 = arith.constant 0 : index
    %3 = vector.load %arg4[%c0_5, %c1, %c0_6] : memref<1x18x128xf32, #tpu.memory_space<vmem>>, vector<1x16x64xf32>
    tpu.vector_store %arg4[%c0_5, %c1, %c0_6], %2 {strides = array<i32>} : memref<1x18x128xf32, #tpu.memory_space<vmem>>, vector<1x16x64xf32>,
    %c0_7 = arith.constant 0 : index
    %c0_8 = arith.constant 0 : index
    %c0_9 = arith.constant 0 : index
    %4 = vector.load %arg4[%c0_7, %c0_8, %c0_9] : memref<1x18x128xf32, #tpu.memory_space<vmem>>, vector<1x16x128xf32>
    %c0_10 = arith.constant 0 : index
    %c1_11 = arith.constant 1 : index
    %c0_12 = arith.constant 0 : index
    %5 = vector.load %arg4[%c0_10, %c1_11, %c0_12] : memref<1x18x128xf32, #tpu.memory_space<vmem>>, vector<1x16x128xf32>
    %c0_13 = arith.constant 0 : index
    %c2 = arith.constant 2 : index
    %c0_14 = arith.constant 0 : index
    %6 = vector.load %arg4[%c0_13, %c2, %c0_14] : memref<1x18x128xf32, #tpu.memory_space<vmem>>, vector<1x16x128xf32>
    %7 = tpu.concatenate %4, %5, %6 in 2 : vector<1x16x128xf32>, vector<1x16x128xf32>, vector<1x16x128xf32> -> vector<1x16x384xf32>
    %8 = vector.shape_cast %7 : vector<1x16x384xf32> to vector<16x384xf32>
    %c0_15 = arith.constant 0 : index
    %c0_16 = arith.constant 0 : index
    %9 = vector.load %arg2[%c0_15, %c0_16] : memref<384x128xf32, #tpu.memory_space<vmem>>, vector<384x128xf32>
    %cst_17 = arith.constant dense<0.000000e+00> : vector<16x128xf32>
    %10 = tpu.matmul %8, %9, %cst_17 {dimension_numbers = #tpu.dot_dimension_numbers<[1], [0], [0], [1], [0, 0, 1, 1], [], []>} : vector<16x384xf32>, vector<384x128xf32>, vector<16x128xf32> -> vector<16x128xf32>
    %11 = vector.shape_cast %10 : vector<16x128xf32> to vector<1x16x128xf32>
    %c0_18 = arith.constant 0 : index
    %c0_19 = arith.constant 0 : index
    %c0_20 = arith.constant 0 : index
    %12 = vector.load %arg3[%c0_18, %c0_19, %c0_20] : memref<1x16x128xf32, #tpu.memory_space<vmem>>, vector<1x16x128xf32>
    tpu.vector_store %arg3[%c0_18, %c0_19, %c0_20], %11 {strides = array<i32>} : memref<1x16x128xf32, #tpu.memory_space<vmem>>, vector<1x16x128xf32>,
    return
  }
  func.func @transform_0(%arg0: i32) -> (i32, i32, i32) {
    %c0_i32 = arith.constant 0 : i32
    %c0_i32_0 = arith.constant 0 : i32
    %c0_i32_1 = arith.constant 0 : i32
    return %arg0, %c0_i32, %c0_i32_0 : i32, i32, i32
  }
  func.func @transform_1(%arg0: i32) -> (i32, i32) {
    %c0_i32 = arith.constant 0 : i32
    %c0_i32_0 = arith.constant 0 : i32
    %c0_i32_1 = arith.constant 0 : i32
    return %c0_i32, %c0_i32_0 : i32, i32
  }
  func.func @transform_2(%arg0: i32) -> (i32, i32, i32) {
    %c0_i32 = arith.constant 0 : i32
    %c0_i32_0 = arith.constant 0 : i32
    %c0_i32_1 = arith.constant 0 : i32
    return %arg0, %c0_i32, %c0_i32_0 : i32, i32, i32
  }
}

</mosaic_0001>

<llo_original>
// kernel: tpu_custom_call.1
$region0: #{tpu_custom_call.1}
  #allocation0 [shape = 'u32[]', space=smem, size = 0x4, offset = 0x4, fixed_abs, tag = 'smem constant byte address 0x4 - core index']
  #allocation1 [shape = 'u32[72,128]{1,0:T(1,128)}', space=vmem, size = 0x9000, scoped, tag = 'internal scratch']
  #allocation2 [shape = 'f32[1,18,128]{2,1,0:T(8,128)}', space=vmem, size = 0x3000, scoped, tag = 'scratch operand']
  %s0 = inlined_call_operand.hbm [shape: f32[2,16,64], index: 0, kind: input, shape index: {}]
  %s1 = inlined_call_operand.hbm [shape: f32[384,128], index: 1, kind: input, shape index: {}]
  %s2 = inlined_call_operand.hbm [shape: f32[2,16,128], index: 2, kind: output, shape index: {}]
  %s3 = sld [smem:[#allocation0]]
  $region49: #{tpu_custom_call.1} parent=0
    _
  %s5 = ssub.s32 1, %s3
  %s6 = scalar_select 0, %s5, %s3
  $region1: #{tpu_custom_call.1} parent=0
    #allocation3 [shape = 'u8[16384]{0}', space=vmem, size = 0x4000, scoped, tag = 'input window, operand 0']
    #allocation4 [shape = 's32[2]{0}', space=sflag, size = 0x8, scoped, tag = 'scoped memory for tpu_custom_call.1']
    #allocation5 [shape = 's32[2]{0}', space=sflag, size = 0x8, scoped, tag = 'scoped memory for tpu_custom_call.1']
    #allocation6 [shape = 'u8[196608]{0}', space=vmem, size = 0x30000, scoped, tag = 'input window, operand 1, single buffered']
    #allocation7 [shape = 's32[1]{0}', space=sflag, size = 0x4, scoped, tag = 'scoped memory for tpu_custom_call.1']
    #allocation8 [shape = 'u8[16384]{0}', space=vmem, size = 0x4000, scoped, tag = 'output window, operand 0']
    %7 = vsyncpa [#allocation4], 0
    %s8 = scalar_lea.sflag [#allocation4], 1
    %9 = vsyncpa %s8, 0
    %10 = vsyncpa [#allocation7], 0
    %11 = vsyncpa [#allocation5], 0
    %s12 = scalar_lea.sflag [#allocation5], 1
    %13 = vsyncpa %s12, 0
    loop: start=0, step=1, limit=4
    $region2: #{tpu_custom_call.1} parent=1 // loop_pre_header
      _
    $region3: #{tpu_custom_call.1} parent=1 // loop_header
      %s15 = sphi 0, %s19
      %p16 = scmp.ge.s32.totalorder %s15, 4
      %s25 = sphi 0, %s27
      %s28 = sphi 0, %s25
      %s29 = sphi 0, %s28
      %s45 = sphi 0, %s29
      %s49 = sphi 0, %s49
      %s51 = sphi 0, %s49
      %s52 = sphi 0, %s51
      %s66 = sphi 0, %s52
      %s72 = sphi 0, %s74
      %s75 = sphi 0, %s72
      %s76 = sphi 0, %s75
      %s92 = sphi 0, %s76
    $region4: #{tpu_custom_call.1} parent=1 // loop_header_branch
      %18 = sbr.rel (%p16) target = $region8
    $region5: #{tpu_custom_call.1} parent=1 // loop_body
      %s20 = ssub.s32 %s15, 1
      %s21 = ssub.s32 %s15, 2
      %s22 = sadd.s32 %s15, 1
      %s23 = ssub.s32 %s15, %s22
      %p24 = scmp.eq.s32.totalorder %s23, 0
      %s26 = sadd.s32 %s25, 1
      %s27 = scalar_select %p24, %s25, %s26
      %p30 = pneg %p24
      %p31 = scmp.eq.s32.totalorder %s15, 1
      %p32 = por %p30, %p31
      %p33 = scmp.ne.s32.totalorder %s25, %s28
      %p34 = scmp.eq.s32.totalorder %s15, 0
      %p35 = por %p33, %p34
      %p36 = scmp.ne.s32.totalorder %s25, %s28
      %p37 = scmp.eq.s32.totalorder %s20, 1
      %p38 = por %p36, %p37
      %p39 = scmp.ne.s32.totalorder %s28, %s29
      %p40 = scmp.eq.s32.totalorder %s20, 0
      %p41 = por %p39, %p40
      %p42 = scmp.ne.s32.totalorder %s28, %s29
      %p43 = scmp.eq.s32.totalorder %s21, 1
      %p44 = por %p42, %p43
      %p46 = scmp.ne.s32.totalorder %s29, %s45
      %p47 = scmp.eq.s32.totalorder %s21, 0
      %p48 = por %p46, %p47
      %s50 = sadd.s32 %s49, 1
      %p53 = scmp.eq.s32.totalorder %s15, 1
      %p54 = scmp.ne.s32.totalorder %s49, %s51
      %p55 = scmp.eq.s32.totalorder %s15, 0
      %p56 = por %p54, %p55
      %p57 = scmp.ne.s32.totalorder %s49, %s51
      %p58 = scmp.eq.s32.totalorder %s20, 1
      %p59 = por %p57, %p58
      %p60 = scmp.ne.s32.totalorder %s51, %s52
      %p61 = scmp.eq.s32.totalorder %s20, 0
      %p62 = por %p60, %p61
      %p63 = scmp.ne.s32.totalorder %s51, %s52
      %p64 = scmp.eq.s32.totalorder %s21, 1
      %p65 = por %p63, %p64
      %p67 = scmp.ne.s32.totalorder %s52, %s66
      %p68 = scmp.eq.s32.totalorder %s21, 0
      %p69 = por %p67, %p68
      %s70 = ssub.s32 %s15, %s22
      %p71 = scmp.eq.s32.totalorder %s70, 0
      %s73 = sadd.s32 %s72, 1
      %s74 = scalar_select %p71, %s72, %s73
      %p77 = pneg %p71
      %p78 = scmp.eq.s32.totalorder %s15, 1
      %p79 = por %p77, %p78
      %p80 = scmp.ne.s32.totalorder %s72, %s75
      %p81 = scmp.eq.s32.totalorder %s15, 0
      %p82 = por %p80, %p81
      %p83 = scmp.ne.s32.totalorder %s72, %s75
      %p84 = scmp.eq.s32.totalorder %s20, 1
      %p85 = por %p83, %p84
      %p86 = scmp.ne.s32.totalorder %s75, %s76
      %p87 = scmp.eq.s32.totalorder %s20, 0
      %p88 = por %p86, %p87
      %p89 = scmp.ne.s32.totalorder %s75, %s76
      %p90 = scmp.eq.s32.totalorder %s21, 1
      %p91 = por %p89, %p90
      %p93 = scmp.ne.s32.totalorder %s76, %s92
      %p94 = scmp.eq.s32.totalorder %s21, 0
      %p95 = por %p93, %p94
      %p96 = scmp.le.s32.totalorder 1, %s15
      %p97 = scmp.lt.s32.totalorder %s15, 3
      %p98 = pnand %p96, %p97
      %p99 = pneg %p98
      // Predicated region
      $region9: #{tpu_custom_call.1} parent=5 // pred_check
        _
      $region10: #{tpu_custom_call.1} parent=5 // pred_check_branch
        %101 = sbr.rel (%p98) target = $region12
      $region11: #{tpu_custom_call.1} parent=5 // pred_region
        %s102 = ssub.s32 %s15, 1
        // Predicated region
        $region13: #{tpu_custom_call.1} parent=11 // pred_check
          %p103 = pneg %p62
        $region14: #{tpu_custom_call.1} parent=11 // pred_check_branch
          %105 = sbr.rel (%p103) target = $region16
        $region15: #{tpu_custom_call.1} parent=11 // pred_region
          %107 = vsyncadd [#allocation7], 0
          %s108 = sshll.u32 %s1, 4
          %s109 = int_to_ptr.hbm [resolvable:$true] %s108
          %s110 = sshll.u32 [#allocation6], 4
          %s111 = int_to_ptr.vmem [resolvable:$true] %s110
          %116 = dma.hbm_to_vmem [thread:$0]  %s109, 6144, %s111, [#allocation7], 128, 128, 8
        $region16: #{tpu_custom_call.1} parent=11 // pred_fallthru
          _
      $region12: #{tpu_custom_call.1} parent=5 // pred_fallthru
        _
      %p117 = scmp.lt.s32.totalorder %s15, 2
      // Predicated region
      $region17: #{tpu_custom_call.1} parent=5 // pred_check
        %p118 = pneg %p117
      $region18: #{tpu_custom_call.1} parent=5 // pred_check_branch
        %120 = sbr.rel (%p118) target = $region20
      $region19: #{tpu_custom_call.1} parent=5 // pred_region
        // Predicated region
        $region21: #{tpu_custom_call.1} parent=19 // pred_check
          %p121 = pneg %p35
        $region22: #{tpu_custom_call.1} parent=19 // pred_check_branch
          %123 = sbr.rel (%p121) target = $region24
        $region23: #{tpu_custom_call.1} parent=19 // pred_region
          %s124 = sand.u32 %s25, 1
          %s125 = scalar_lea.sflag [#allocation4], %s124
          %s126 = sand.u32 %s25, 1
          %s127 = smul.addr %s126, 16
          %s128 = scalar_lea.vmem [#allocation3], %s127
          %130 = vsyncadd %s125, 0
          %s131 = smul.addr %s15, 2
          %s132 = smul.addr %s131, 8
          %s133 = scalar_lea.hbm %s0, %s132
          %s134 = sshll.u32 %s133, 4
          %s135 = int_to_ptr.hbm [resolvable:$true] %s134
          %s136 = sshll.u32 %s128, 4
          %s137 = int_to_ptr.vmem [resolvable:$true] %s136
          %142 = dma.hbm_to_vmem [thread:$0]  %s135, 256, %s137, %s125, 128, 128, 8
        $region24: #{tpu_custom_call.1} parent=19 // pred_fallthru
          _
      $region20: #{tpu_custom_call.1} parent=5 // pred_fallthru
        _
      %p143 = scmp.le.s32.totalorder 1, %s15
      %p144 = scmp.lt.s32.totalorder %s15, 3
      %p145 = pnand %p143, %p144
      %p146 = pneg %p145
      // Predicated region
      $region25: #{tpu_custom_call.1} parent=5 // pred_check
        _
      $region26: #{tpu_custom_call.1} parent=5 // pred_check_branch
        %148 = sbr.rel (%p145) target = $region28
      $region27: #{tpu_custom_call.1} parent=5 // pred_region
        %s149 = ssub.s32 %s15, 1
        %s150 = sand.u32 %s28, 1
        %s151 = scalar_lea.sflag [#allocation4], %s150
        %s152 = sand.u32 %s28, 1
        %s153 = smul.addr %s152, 16
        %s154 = scalar_lea.vmem [#allocation3], %s153
        // Predicated region
        $region29: #{tpu_custom_call.1} parent=27 // pred_check
          %p155 = pneg %p41
        $region30: #{tpu_custom_call.1} parent=27 // pred_check_branch
          %157 = sbr.rel (%p155) target = $region32
        $region31: #{tpu_custom_call.1} parent=27 // pred_region
          %159 = dma.done %s151, 256
        $region32: #{tpu_custom_call.1} parent=27 // pred_fallthru
          _
        // Predicated region
        $region33: #{tpu_custom_call.1} parent=27 // pred_check
          %p160 = pneg %p62
        $region34: #{tpu_custom_call.1} parent=27 // pred_check_branch
          %162 = sbr.rel (%p160) target = $region36
        $region35: #{tpu_custom_call.1} parent=27 // pred_region
          %164 = dma.done [#allocation7], 6144
        $region36: #{tpu_custom_call.1} parent=27 // pred_fallthru
          _
        %s165 = sand.u32 %s28, 1
        %s166 = scalar_lea.sflag [#allocation4], %s165
        %s167 = sand.u32 %s28, 1
        %s168 = smul.addr %s167, 16
        %s169 = scalar_lea.vmem [#allocation3], %s168
        %p170 = pneg %p41
        %p171 = pneg %p38
        %p172 = pneg %p62
        %p173 = pneg %p59
        %p174 = pneg %p88
        %p175 = pneg %p85
        %s176 = sand.u32 %s75, 1
        %s177 = scalar_lea.sflag [#allocation5], %s176
        %s178 = sand.u32 %s75, 1
        %s179 = smul.addr %s178, 16
        %s180 = scalar_lea.vmem [#allocation8], %s179
        %181 = vst [vmem:[#allocation2] sm:$0xff] 0.0
        %182 = vst [vmem:[#allocation2 + $0x8] sm:$0xff] 0.0
        %183 = vst [vmem:[#allocation2 + $0x10] sm:$0x3] 0.0
        %v184 = vld [vmem:[%s154] sm:$0xff]
        %v185 = vld [vmem:[%s154 + $0x8] sm:$0xff]
        %vm186 = vcmask 523264
        %187 = vst.msk [vmem:[#allocation2 + $0x1] sm:$0xff] %vm186, %v184
        %188 = vst.msk [vmem:[#allocation2 + $0x9] sm:$0xff] %vm186, %v185
        %v189 = vld [vmem:[#allocation2] sm:$0xff]
        %v190 = vld [vmem:[#allocation2 + $0x8] sm:$0xff]
        %v191 = vld [vmem:[#allocation2 + $0x1] sm:$0xff]
        %v192 = vld [vmem:[#allocation2 + $0x9] sm:$0xff]
        %v193 = vld [vmem:[#allocation2 + $0x2] sm:$0xff]
        %v194 = vld [vmem:[#allocation2 + $0xa] sm:$0xff]
        %v195 = vld [vmem:[#allocation6] sm:$0xff]
        %v196 = vld [vmem:[#allocation6 + $0x8] sm:$0xff]
        %v197 = vld [vmem:[#allocation6 + $0x10] sm:$0xff]
        %v198 = vld [vmem:[#allocation6 + $0x18] sm:$0xff]
        %v199 = vld [vmem:[#allocation6 + $0x20] sm:$0xff]
        %v200 = vld [vmem:[#allocation6 + $0x28] sm:$0xff]
        %v201 = vld [vmem:[#allocation6 + $0x30] sm:$0xff]
        %v202 = vld [vmem:[#allocation6 + $0x38] sm:$0xff]
        %v203 = vld [vmem:[#allocation6 + $0x40] sm:$0xff]
        %v204 = vld [vmem:[#allocation6 + $0x48] sm:$0xff]
        %v205 = vld [vmem:[#allocation6 + $0x50] sm:$0xff]
        %v206 = vld [vmem:[#allocation6 + $0x58] sm:$0xff]
        %v207 = vld [vmem:[#allocation6 + $0x60] sm:$0xff]
        %v208 = vld [vmem:[#allocation6 + $0x68] sm:$0xff]
        %v209 = vld [vmem:[#allocation6 + $0x70] sm:$0xff]
        %v210 = vld [vmem:[#allocation6 + $0x78] sm:$0xff]
        %v211 = vld [vmem:[#allocation6 + $0x80] sm:$0xff]
        %v212 = vld [vmem:[#allocation6 + $0x88] sm:$0xff]
        %v213 = vld [vmem:[#allocation6 + $0x90] sm:$0xff]
        %v214 = vld [vmem:[#allocation6 + $0x98] sm:$0xff]
        %v215 = vld [vmem:[#allocation6 + $0xa0] sm:$0xff]
        %v216 = vld [vmem:[#allocation6 + $0xa8] sm:$0xff]
        %v217 = vld [vmem:[#allocation6 + $0xb0] sm:$0xff]
        %v218 = vld [vmem:[#allocation6 + $0xb8] sm:$0xff]
        %v219 = vld [vmem:[#allocation6 + $0xc0] sm:$0xff]
        %v220 = vld [vmem:[#allocation6 + $0xc8] sm:$0xff]
        %v221 = vld [vmem:[#allocation6 + $0xd0] sm:$0xff]
        %v222 = vld [vmem:[#allocation6 + $0xd8] sm:$0xff]
        %v223 = vld [vmem:[#allocation6 + $0xe0] sm:$0xff]
        %v224 = vld [vmem:[#allocation6 + $0xe8] sm:$0xff]
        %v225 = vld [vmem:[#allocation6 + $0xf0] sm:$0xff]
        %v226 = vld [vmem:[#allocation6 + $0xf8] sm:$0xff]
        %v227 = vld [vmem:[#allocation6 + $0x100] sm:$0xff]
        %v228 = vld [vmem:[#allocation6 + $0x108] sm:$0xff]
        %v229 = vld [vmem:[#allocation6 + $0x110] sm:$0xff]
        %v230 = vld [vmem:[#allocation6 + $0x118] sm:$0xff]
        %v231 = vld [vmem:[#allocation6 + $0x120] sm:$0xff]
        %v232 = vld [vmem:[#allocation6 + $0x128] sm:$0xff]
        %v233 = vld [vmem:[#allocation6 + $0x130] sm:$0xff]
        %v234 = vld [vmem:[#allocation6 + $0x138] sm:$0xff]
        %v235 = vld [vmem:[#allocation6 + $0x140] sm:$0xff]
        %v236 = vld [vmem:[#allocation6 + $0x148] sm:$0xff]
        %v237 = vld [vmem:[#allocation6 + $0x150] sm:$0xff]
        %v238 = vld [vmem:[#allocation6 + $0x158] sm:$0xff]
        %v239 = vld [vmem:[#allocation6 + $0x160] sm:$0xff]
        %v240 = vld [vmem:[#allocation6 + $0x168] sm:$0xff]
        %v241 = vld [vmem:[#allocation6 + $0x170] sm:$0xff]
        %v242 = vld [vmem:[#allocation6 + $0x178] sm:$0xff]
        %243 = vmatpush.msra.mxu0 %v210
        %244 = vmatpush.msra.mxu0 %v209
        %245 = vmatpush.msra.mxu0 %v208
        %246 = vmatpush.msra.mxu0 %v207
        %247 = vmatpush.msra.mxu0 %v206
        %248 = vmatpush.msra.mxu0 %v205
        %249 = vmatpush.msra.mxu0 %v204
        %250 = vmatpush.msra.mxu0 %v203
        %251 = vmatpush.msra.mxu0 %v202
        %252 = vmatpush.msra.mxu0 %v201
        %253 = vmatpush.msra.mxu0 %v200
        %254 = vmatpush.msra.mxu0 %v199
        %255 = vmatpush.msra.mxu0 %v198
        %256 = vmatpush.msra.mxu0 %v197
        %257 = vmatpush.msra.mxu0 %v196
        %258 = vmatpush.msra.mxu0 %v195
        %259 = vmatmul.f32.gmra.mxu0 %v189
        %v260 = vpop.f32.mrf.mxu0
        %v261 = vadd.f32 0.0, %v260
        %262 = vmatmul.f32.gmra.mxu0 %v190
        %v263 = vpop.f32.mrf.mxu0
        %v264 = vadd.f32 0.0, %v263
        %265 = vdwg.mxu0
        %266 = vmatpush.msra.mxu0 %v226
        %267 = vmatpush.msra.mxu0 %v225
        %268 = vmatpush.msra.mxu0 %v224
        %269 = vmatpush.msra.mxu0 %v223
        %270 = vmatpush.msra.mxu0 %v222
        %271 = vmatpush.msra.mxu0 %v221
        %272 = vmatpush.msra.mxu0 %v220
        %273 = vmatpush.msra.mxu0 %v219
        %274 = vmatpush.msra.mxu0 %v218
        %275 = vmatpush.msra.mxu0 %v217
        %276 = vmatpush.msra.mxu0 %v216
        %277 = vmatpush.msra.mxu0 %v215
        %278 = vmatpush.msra.mxu0 %v214
        %279 = vmatpush.msra.mxu0 %v213
        %280 = vmatpush.msra.mxu0 %v212
        %281 = vmatpush.msra.mxu0 %v211
        %282 = vmatmul.f32.gmra.mxu0 %v191
        %v283 = vpop.f32.mrf.mxu0
        %v284 = vadd.f32 %v261, %v283
        %285 = vmatmul.f32.gmra.mxu0 %v192
        %v286 = vpop.f32.mrf.mxu0
        %v287 = vadd.f32 %v264, %v286
        %288 = vdwg.mxu0
        %289 = vmatpush.msra.mxu0 %v242
        %290 = vmatpush.msra.mxu0 %v241
        %291 = vmatpush.msra.mxu0 %v240
        %292 = vmatpush.msra.mxu0 %v239
        %293 = vmatpush.msra.mxu0 %v238
        %294 = vmatpush.msra.mxu0 %v237
        %295 = vmatpush.msra.mxu0 %v236
        %296 = vmatpush.msra.mxu0 %v235
        %297 = vmatpush.msra.mxu0 %v234
        %298 = vmatpush.msra.mxu0 %v233
        %299 = vmatpush.msra.mxu0 %v232
        %300 = vmatpush.msra.mxu0 %v231
        %301 = vmatpush.msra.mxu0 %v230
        %302 = vmatpush.msra.mxu0 %v229
        %303 = vmatpush.msra.mxu0 %v228
        %304 = vmatpush.msra.mxu0 %v227
        %305 = vmatmul.f32.gmra.mxu0 %v193
        %v306 = vpop.f32.mrf.mxu0
        %v307 = vadd.f32 %v284, %v306
        %308 = vmatmul.f32.gmra.mxu0 %v194
        %v309 = vpop.f32.mrf.mxu0
        %v310 = vadd.f32 %v287, %v309
        %311 = vdwg.mxu0
        %312 = vst [vmem:[%s180] sm:$0xff] %v307
        %313 = vst [vmem:[%s180 + $0x8] sm:$0xff] %v310
        %s314 = sand.u32 %s75, 1
        %s315 = scalar_lea.sflag [#allocation5], %s314
        %s316 = sand.u32 %s75, 1
        %s317 = smul.addr %s316, 16
        %s318 = scalar_lea.vmem [#allocation8], %s317
        // Predicated region
        $region37: #{tpu_custom_call.1} parent=27 // pred_check
          %p319 = pneg %p85
        $region38: #{tpu_custom_call.1} parent=27 // pred_check_branch
          %321 = sbr.rel (%p319) target = $region40
        $region39: #{tpu_custom_call.1} parent=27 // pred_region
          %323 = vsyncadd %s315, 0
          %s324 = smul.addr %s20, 2
          %s325 = smul.addr %s324, 8
          %s326 = scalar_lea.hbm %s2, %s325
          %s327 = sshll.u32 %s318, 4
          %s328 = int_to_ptr.vmem [resolvable:$true] %s327
          %s329 = sshll.u32 %s326, 4
          %s330 = int_to_ptr.hbm [resolvable:$true] %s329
          %335 = dma.vmem_to_hbm [thread:$0]  %s328, 256, %s330, %s315, 128, 128, 8
        $region40: #{tpu_custom_call.1} parent=27 // pred_fallthru
          _
      $region28: #{tpu_custom_call.1} parent=5 // pred_fallthru
        _
      %p336 = scmp.le.s32.totalorder 2, %s15
      // Predicated region
      $region41: #{tpu_custom_call.1} parent=5 // pred_check
        %p337 = pneg %p336
      $region42: #{tpu_custom_call.1} parent=5 // pred_check_branch
        %339 = sbr.rel (%p337) target = $region44
      $region43: #{tpu_custom_call.1} parent=5 // pred_region
        %s340 = ssub.s32 %s15, 2
        // Predicated region
        $region45: #{tpu_custom_call.1} parent=43 // pred_check
          %p341 = pneg %p91
        $region46: #{tpu_custom_call.1} parent=43 // pred_check_branch
          %343 = sbr.rel (%p341) target = $region48
        $region47: #{tpu_custom_call.1} parent=43 // pred_region
          %s344 = sand.u32 %s76, 1
          %s345 = scalar_lea.sflag [#allocation5], %s344
          %s346 = sand.u32 %s76, 1
          %s347 = smul.addr %s346, 16
          %s348 = scalar_lea.vmem [#allocation8], %s347
          %350 = dma.done %s345, 256
        $region48: #{tpu_custom_call.1} parent=43 // pred_fallthru
          _
      $region44: #{tpu_custom_call.1} parent=5 // pred_fallthru
        _
    $region6: #{tpu_custom_call.1} parent=1 // loop_footer
      %s19 = sadd.s32 1, %s15
    $region7: #{tpu_custom_call.1} parent=1 // loop_footer_branch
      %14 = sbr.rel target = $region3
    $region8: #{tpu_custom_call.1} parent=1 // loop_exit
      _
    %351 = vsyncpa [#allocation4], 1
    %s352 = scalar_lea.sflag [#allocation4], 1
    %353 = vsyncpa %s352, 1
    %354 = vsyncpa [#allocation7], 1
    %355 = vsyncpa [#allocation5], 1
    %s356 = scalar_lea.sflag [#allocation5], 1
    %357 = vsyncpa %s356, 1

</llo_original>
